<compile_context>
chip_gen: v5e
topology: v5e:2x2
jax: 0.10.0
libtpu: 0.0.40
codegen_flags: <defaults>
</compile_context>

<pallas_src>
import functools

import jax
import jax.numpy as jnp
from jax import lax
from jax.experimental import pallas as pl
from jax.experimental.pallas import tpu as pltpu


def _round_up(x, m):
    return ((x + m - 1) // m) * m


def _vmem_capacity_bytes():
    """Physical per-core VMEM; conservative fallback if the query fails."""
    try:
        info = pltpu.get_tpu_info()
        cap = getattr(info, "vmem_capacity_bytes", None)
        if cap:
            return int(cap)
    except Exception:
        pass
    return 64 * 1024 * 1024  # v7x-sized fallback (safe on all targets)


def _downsample_kernel(ev_ref, evh_ref, od_ref, w_ref, b_ref, out_ref):
    # ev_ref : (1, TH, Wq, K)  even padded rows 2r (kw taps concat along channel)
    # evh_ref: (1, 1,  Wq, K)  even-row halo (global row i*TH + TH)
    # od_ref : (1, TH, Wq, K)  odd padded rows 2r+1
    # w_ref  : (3, K, Cop)     per-kh weight slab, K = 3*Cin (kw-major, cin-minor)
    # b_ref  : (1, Cop)        f32 bias
    # out_ref: (1, TH, Wq, Cop)
    TH, Wq, Cop = out_ref.shape[1], out_ref.shape[2], out_ref.shape[3]
    K = w_ref.shape[1]
    M = TH * Wq

    # Layout-free reshapes: Wq is a sublane multiple, so collapsing (TH, Wq)
    # preserves the (8, 128) tiling.
    e = ev_ref[0].reshape(M, K)
    o = od_ref[0].reshape(M, K)
    h = evh_ref[0, 0]                                     # (Wq, K)

    # kh = 0 and kh = 1 over the full tile: chained f32 accumulation, K = 3*Cin.
    acc = jnp.dot(e, w_ref[0], preferred_element_type=jnp.float32)
    acc = acc + jnp.dot(o, w_ref[1], preferred_element_type=jnp.float32)
    acc = acc + b_ref[...]                                # bias once, in f32

    # kh = 2: even rows shifted down by one output row.  Body rows 1..TH-1 feed
    # output rows 0..TH-2; the 1-row halo feeds output row TH-1.  All slices
    # are tile aligned (multiples of Wq sublanes) -> no concatenate / copy.
    bot = acc[(TH - 1) * Wq:] + jnp.dot(h, w_ref[2],
                                        preferred_element_type=jnp.float32)
    out_ref[0, TH - 1] = bot.astype(out_ref.dtype)
    if TH > 1:
        top = acc[:(TH - 1) * Wq] + jnp.dot(e[Wq:], w_ref[2],
                                            preferred_element_type=jnp.float32)
        out_ref[0, :TH - 1] = top.reshape(TH - 1, Wq, Cop).astype(out_ref.dtype)


def downsample_forward(x_nchw, weight, bias, *, row_tile=None, compute_dtype=None):
    """Equivalent to nn.Conv2d(C, C, kernel_size=3, padding=1, stride=2)(x)."""
    N, C, H, W = x_nchw.shape
    Cout, Cin, KH, KW = weight.shape
    assert Cin == C and KH == 3 and KW == 3
    Ho = (H - 1) // 2 + 1
    Wo = (W - 1) // 2 + 1

    cdt = jnp.dtype(compute_dtype) if compute_dtype is not None else jnp.dtype(x_nchw.dtype)
    out_dtype = x_nchw.dtype
    sub = 8 if cdt.itemsize >= 4 else 16           # sublane packing multiple
    K = 3 * Cin

    Wq = _round_up(Wo, sub)                        # sublane-aligned output width
    lane = 256 if Cout > 128 else 128              # fill 2x256^2 MXUs on v6e/v7x
    Cop = _round_up(Cout, lane)                    # lane-dense output channels

    # ---- per-chip VMEM budget & row-tile heuristic ----
    vmem_cap = _vmem_capacity_bytes()
    vmem_limit = min(int(0.75 * vmem_cap), 100 * 1024 * 1024)   # ~96MiB v5e/v6e, ~48MiB v7x
    target_m = 2048 if vmem_limit >= 80 * 1024 * 1024 else 1024
    if row_tile is None:
        th = max(1, target_m // max(Wq, 1))
        th = max(th, min(8, Ho))                   # avoid degenerate TH=1 on wide images
        th = min(th, Ho)
        itm = cdt.itemsize
        oitm = jnp.dtype(out_dtype).itemsize

        def footprint(t):                          # double-buffered per-step bytes (+acc)
            act = 2 * (2 * t + 1) * Wq * K * itm
            outb = 2 * t * Wq * Cop * oitm
            wgt = 2 * (3 * K * Cop * itm + Cop * 4)
            accb = t * Wq * Cop * 4
            return act + outb + wgt + accb

        while th > 1 and footprint(th) > int(0.6 * vmem_limit):
            th -= 1
    else:
        th = max(1, min(int(row_tile), Ho))
    TH = th
    Gh = -(-Ho // TH)                              # number of output-row tiles
    Hq = Gh * TH                                   # padded output rows

    # ---- layout glue: one transpose, one fused pad, strided-slice stacks ----
    # TODO(synk): drop the NCHW<->NHWC transposes if the surrounding model can
    # carry NHWC activations end-to-end.
    x = jnp.transpose(x_nchw, (0, 2, 3, 1)).astype(cdt)          # NHWC
    x_pad = jnp.pad(x, ((0, 0), (1, 2 * Hq - H), (1, 2 * Wq - W), (0, 0)))

    xe = x_pad[:, 0:2 * Hq + 1:2]                  # even padded rows: (N, Hq+1, 2Wq+1, C)
    xo = x_pad[:, 1:2 * Hq:2]                      # odd  padded rows: (N, Hq,   2Wq+1, C)

    def kw_concat(slab):                           # (N, R, 2Wq+1, C) -> (N, R, Wq, 3C)
        taps = [slab[:, :, kw:kw + 2 * Wq:2] for kw in range(3)]
        return jnp.stack(taps, axis=3).reshape(slab.shape[0], slab.shape[1], Wq, K)

    x_even = kw_concat(xe)                         # (N, Hq+1, Wq, 3C)
    x_odd = kw_concat(xo)                          # (N, Hq,   Wq, 3C)

    # weight (Cout, Cin, 3, 3) -> (kh, kw, Cin, Cout) -> (3, 3*Cin, Cop), padded.
    w_t = jnp.transpose(weight, (2, 3, 1, 0)).reshape(3, K, Cout)
    w_t = jnp.pad(w_t, ((0, 0), (0, 0), (0, Cop - Cout))).astype(cdt)
    b_t = jnp.pad(bias, (0, Cop - Cout)).reshape(1, Cop).astype(jnp.float32)
    # TODO(synk): for very large Cin/Cout on v7x (64 MiB VMEM), single-buffer the
    # grid-invariant weights (pipeline_mode=pl.Buffered(1)) and/or add a Cout-tile
    # grid axis so only a (3, K, TN) weight slab is resident per step.

    body = lambda n, i: (n, i, 0, 0)
    halo = lambda n, i: (n, TH * (i + 1), 0, 0)    # row-block size 1 -> element row
    wmap = lambda n, i: (0, 0, 0)
    bmap = lambda n, i: (0, 0)

    itm = cdt.itemsize
    flops = 6 * N * Hq * Wq * K * Cop              # 3 tap groups x 2 flops/MAC
    bytes_accessed = ((x_even.size + x_odd.size + w_t.size) * itm
                      + b_t.size * 4
                      + N * Hq * Wq * Cop * jnp.dtype(out_dtype).itemsize)

    out_padded = pl.pallas_call(
        _downsample_kernel,
        out_shape=jax.ShapeDtypeStruct((N, Hq, Wq, Cop), out_dtype),
        grid_spec=pltpu.PrefetchScalarGridSpec(
            num_scalar_prefetch=0,
            grid=(N, Gh),
            in_specs=[
                pl.BlockSpec((1, TH, Wq, K), body),    # even-row body
                pl.BlockSpec((1, 1, Wq, K), halo),     # even-row halo row
                pl.BlockSpec((1, TH, Wq, K), body),    # odd-row body
                pl.BlockSpec((3, K, Cop), wmap),       # weights (grid-invariant, resident)
                pl.BlockSpec((1, Cop), bmap),          # bias    (grid-invariant, resident)
            ],
            out_specs=pl.BlockSpec((1, TH, Wq, Cop), body),
        ),
        compiler_params=pltpu.CompilerParams(
            dimension_semantics=("parallel", "parallel"),
            vmem_limit_bytes=vmem_limit,
        ),
        cost_estimate=pl.CostEstimate(
            flops=flops, transcendentals=0, bytes_accessed=bytes_accessed),
    )(x_even, x_even, x_odd, w_t, b_t)

    out = out_padded[:, :Ho, :Wo, :Cout]
    return jnp.transpose(out, (0, 3, 1, 2))        # back to NCHW


def _reference(x, weight, bias):
    return lax.conv_general_dilated(
        x, weight, window_strides=(2, 2), padding=((1, 1), (1, 1)),
        dimension_numbers=("NCHW", "OIHW", "NCHW"),
    ) + bias.reshape(1, -1, 1, 1)


if __name__ == "__main__":
    key = jax.random.PRNGKey(0)
    k_x, k_w, k_b, k_x2 = jax.random.split(key, 4)

    N, C, H, W = 2, 4, 16, 16
    x = jax.random.normal(k_x, (N, C, H, W), dtype=jnp.float32)

    fan_in = C * 3 * 3
    bound = 1.0 / (fan_in ** 0.5)
    weight = jax.random.uniform(k_w, (C, C, 3, 3), jnp.float32, -bound, bound)
    bias = jax.random.uniform(k_b, (C,), jnp.float32, -bound, bound)

    # Multiple row tiles -> exercises the halo BlockSpec, split kh=2 path and
    # the software pipeline.
    fwd = jax.jit(functools.partial(downsample_forward, row_tile=4))
    out = jax.block_until_ready(fwd(x, weight, bias))
    ref = _reference(x, weight, bias)
    assert out.shape == (N, C, 8, 8), out.shape
    assert jnp.allclose(out, ref, atol=1e-5, rtol=1e-5)

    # Odd spatial size + default (VMEM-derived) tile heuristic path.
    x2 = jax.random.normal(k_x2, (1, C, 15, 15), dtype=jnp.float32)
    out2 = jax.block_until_ready(jax.jit(downsample_forward)(x2, weight, bias))
    ref2 = _reference(x2, weight, bias)
    assert out2.shape == (1, C, 8, 8), out2.shape
    assert jnp.allclose(out2, ref2, atol=1e-5, rtol=1e-5)

    print("KERNEL_OK")
</pallas_src>

<mosaic_0001>
module attributes {stable_mosaic.version = 11 : i64} {
  func.func @_downsample_kernel(%arg0: i32, %arg1: i32, %arg2: memref<1x4x8x12xf32, #tpu.memory_space<vmem>>, %arg3: memref<1x1x8x12xf32, #tpu.memory_space<vmem>>, %arg4: memref<1x4x8x12xf32, #tpu.memory_space<vmem>>, %arg5: memref<3x12x128xf32, #tpu.memory_space<vmem>>, %arg6: memref<1x128xf32, #tpu.memory_space<vmem>>, %arg7: memref<1x4x8x128xf32, #tpu.memory_space<vmem>>) attributes {dimension_semantics = [#tpu.dimension_semantics<parallel>, #tpu.dimension_semantics<parallel>], iteration_bounds = array<i64: 2, 2>, scalar_prefetch = 0 : i64, scratch_operands = 0 : i64, tpu.core_type = #tpu.core_type<tc>, window_params = [{transform_indices = @transform_0, window_bounds = array<i64: 1, 4, 8, 12>}, {transform_indices = @transform_1, window_bounds = array<i64: 1, 1, 8, 12>}, {transform_indices = @transform_2, window_bounds = array<i64: 1, 4, 8, 12>}, {pipeline_mode = #tpu.pipeline_mode<synchronous>, transform_indices = @transform_3, window_bounds = array<i64: 3, 12, 128>}, {pipeline_mode = #tpu.pipeline_mode<synchronous>, transform_indices = @transform_4, window_bounds = array<i64: 1, 128>}, {transform_indices = @transform_5, window_bounds = array<i64: 1, 4, 8, 128>}]} {
    %c0 = arith.constant 0 : index
    %c0_0 = arith.constant 0 : index
    %c0_1 = arith.constant 0 : index
    %c0_2 = arith.constant 0 : index
    %0 = vector.load %arg2[%c0, %c0_0, %c0_1, %c0_2] : memref<1x4x8x12xf32, #tpu.memory_space<vmem>>, vector<1x4x8x12xf32>
    %1 = vector.shape_cast %0 : vector<1x4x8x12xf32> to vector<4x8x12xf32>
    %2 = vector.shape_cast %1 : vector<4x8x12xf32> to vector<32x12xf32>
    %c0_3 = arith.constant 0 : index
    %c0_4 = arith.constant 0 : index
    %c0_5 = arith.constant 0 : index
    %c0_6 = arith.constant 0 : index
    %3 = vector.load %arg4[%c0_3, %c0_4, %c0_5, %c0_6] : memref<1x4x8x12xf32, #tpu.memory_space<vmem>>, vector<1x4x8x12xf32>
    %4 = vector.shape_cast %3 : vector<1x4x8x12xf32> to vector<4x8x12xf32>
    %5 = vector.shape_cast %4 : vector<4x8x12xf32> to vector<32x12xf32>
    %c0_7 = arith.constant 0 : index
    %c0_8 = arith.constant 0 : index
    %c0_9 = arith.constant 0 : index
    %c0_10 = arith.constant 0 : index
    %6 = vector.load %arg3[%c0_7, %c0_8, %c0_9, %c0_10] : memref<1x1x8x12xf32, #tpu.memory_space<vmem>>, vector<1x1x8x12xf32>
    %7 = vector.shape_cast %6 : vector<1x1x8x12xf32> to vector<8x12xf32>
    %c0_11 = arith.constant 0 : index
    %c0_12 = arith.constant 0 : index
    %c0_13 = arith.constant 0 : index
    %8 = vector.load %arg5[%c0_11, %c0_12, %c0_13] : memref<3x12x128xf32, #tpu.memory_space<vmem>>, vector<1x12x128xf32>
    %9 = vector.shape_cast %8 : vector<1x12x128xf32> to vector<12x128xf32>
    %cst = arith.constant dense<0.000000e+00> : vector<32x128xf32>
    %10 = tpu.matmul %2, %9, %cst {dimension_numbers = #tpu.dot_dimension_numbers<[1], [0], [0], [1], [0, 0, 1, 1], [], []>} : vector<32x12xf32>, vector<12x128xf32>, vector<32x128xf32> -> vector<32x128xf32>
    %c1 = arith.constant 1 : index
    %c0_14 = arith.constant 0 : index
    %c0_15 = arith.constant 0 : index
    %11 = vector.load %arg5[%c1, %c0_14, %c0_15] : memref<3x12x128xf32, #tpu.memory_space<vmem>>, vector<1x12x128xf32>
    %12 = vector.shape_cast %11 : vector<1x12x128xf32> to vector<12x128xf32>
    %cst_16 = arith.constant dense<0.000000e+00> : vector<32x128xf32>
    %13 = tpu.matmul %5, %12, %cst_16 {dimension_numbers = #tpu.dot_dimension_numbers<[1], [0], [0], [1], [0, 0, 1, 1], [], []>} : vector<32x12xf32>, vector<12x128xf32>, vector<32x128xf32> -> vector<32x128xf32>
    %14 = arith.addf %10, %13 : vector<32x128xf32>
    %c0_17 = arith.constant 0 : index
    %c0_18 = arith.constant 0 : index
    %15 = vector.load %arg6[%c0_17, %c0_18] : memref<1x128xf32, #tpu.memory_space<vmem>>, vector<1x128xf32>
    %16 = vector.broadcast %15 : vector<1x128xf32> to vector<32x128xf32>
    %17 = arith.addf %14, %16 : vector<32x128xf32>
    %18 = vector.extract_strided_slice %17 {offsets = [24, 0], sizes = [8, 128], strides = [1, 1]} : vector<32x128xf32> to vector<8x128xf32>
    %c2 = arith.constant 2 : index
    %c0_19 = arith.constant 0 : index
    %c0_20 = arith.constant 0 : index
    %19 = vector.load %arg5[%c2, %c0_19, %c0_20] : memref<3x12x128xf32, #tpu.memory_space<vmem>>, vector<1x12x128xf32>
    %20 = vector.shape_cast %19 : vector<1x12x128xf32> to vector<12x128xf32>
    %cst_21 = arith.constant dense<0.000000e+00> : vector<8x128xf32>
    %21 = tpu.matmul %7, %20, %cst_21 {dimension_numbers = #tpu.dot_dimension_numbers<[1], [0], [0], [1], [0, 0, 1, 1], [], []>} : vector<8x12xf32>, vector<12x128xf32>, vector<8x128xf32> -> vector<8x128xf32>
    %22 = arith.addf %18, %21 : vector<8x128xf32>
    %c0_22 = arith.constant 0 : index
    %c3 = arith.constant 3 : index
    %c0_23 = arith.constant 0 : index
    %c0_24 = arith.constant 0 : index
    %23 = vector.load %arg7[%c0_22, %c3, %c0_23, %c0_24] : memref<1x4x8x128xf32, #tpu.memory_space<vmem>>, vector<1x1x8x128xf32>
    %24 = vector.shape_cast %23 : vector<1x1x8x128xf32> to vector<8x128xf32>
    %25 = vector.shape_cast %22 : vector<8x128xf32> to vector<1x1x8x128xf32>
    tpu.vector_store %arg7[%c0_22, %c3, %c0_23, %c0_24], %25 {strides = array<i32>} : memref<1x4x8x128xf32, #tpu.memory_space<vmem>>, vector<1x1x8x128xf32>,
    %26 = vector.extract_strided_slice %17 {offsets = [0, 0], sizes = [24, 128], strides = [1, 1]} : vector<32x128xf32> to vector<24x128xf32>
    %27 = vector.extract_strided_slice %2 {offsets = [8, 0], sizes = [24, 12], strides = [1, 1]} : vector<32x12xf32> to vector<24x12xf32>
    %c2_25 = arith.constant 2 : index
    %c0_26 = arith.constant 0 : index
    %c0_27 = arith.constant 0 : index
    %28 = vector.load %arg5[%c2_25, %c0_26, %c0_27] : memref<3x12x128xf32, #tpu.memory_space<vmem>>, vector<1x12x128xf32>
    %29 = vector.shape_cast %28 : vector<1x12x128xf32> to vector<12x128xf32>
    %cst_28 = arith.constant dense<0.000000e+00> : vector<24x128xf32>
    %30 = tpu.matmul %27, %29, %cst_28 {dimension_numbers = #tpu.dot_dimension_numbers<[1], [0], [0], [1], [0, 0, 1, 1], [], []>} : vector<24x12xf32>, vector<12x128xf32>, vector<24x128xf32> -> vector<24x128xf32>
    %31 = arith.addf %26, %30 : vector<24x128xf32>
    %32 = vector.shape_cast %31 : vector<24x128xf32> to vector<3x8x128xf32>
    %c0_29 = arith.constant 0 : index
    %c0_30 = arith.constant 0 : index
    %c0_31 = arith.constant 0 : index
    %c0_32 = arith.constant 0 : index
    %33 = vector.load %arg7[%c0_29, %c0_30, %c0_31, %c0_32] : memref<1x4x8x128xf32, #tpu.memory_space<vmem>>, vector<1x3x8x128xf32>
    %34 = vector.shape_cast %33 : vector<1x3x8x128xf32> to vector<3x8x128xf32>
    %35 = vector.shape_cast %32 : vector<3x8x128xf32> to vector<1x3x8x128xf32>
    tpu.vector_store %arg7[%c0_29, %c0_30, %c0_31, %c0_32], %35 {strides = array<i32>} : memref<1x4x8x128xf32, #tpu.memory_space<vmem>>, vector<1x3x8x128xf32>,
    return
  }
  func.func @transform_0(%arg0: i32, %arg1: i32) -> (i32, i32, i32, i32) {
    %c0_i32 = arith.constant 0 : i32
    %c0_i32_0 = arith.constant 0 : i32
    %c0_i32_1 = arith.constant 0 : i32
    return %arg0, %arg1, %c0_i32, %c0_i32_0 : i32, i32, i32, i32
  }
  func.func @transform_1(%arg0: i32, %arg1: i32) -> (i32, i32, i32, i32) {
    %c1_i32 = arith.constant 1 : i32
    %0 = arith.addi %arg1, %c1_i32 : i32
    %c4_i32 = arith.constant 4 : i32
    %1 = arith.muli %c4_i32, %0 : i32
    %c0_i32 = arith.constant 0 : i32
    %c0_i32_0 = arith.constant 0 : i32
    %c0_i32_1 = arith.constant 0 : i32
    return %arg0, %1, %c0_i32, %c0_i32_0 : i32, i32, i32, i32
  }
  func.func @transform_2(%arg0: i32, %arg1: i32) -> (i32, i32, i32, i32) {
    %c0_i32 = arith.constant 0 : i32
    %c0_i32_0 = arith.constant 0 : i32
    %c0_i32_1 = arith.constant 0 : i32
    return %arg0, %arg1, %c0_i32, %c0_i32_0 : i32, i32, i32, i32
  }
  func.func @transform_3(%arg0: i32, %arg1: i32) -> (i32, i32, i32) {
    %c0_i32 = arith.constant 0 : i32
    %c0_i32_0 = arith.constant 0 : i32
    %c0_i32_1 = arith.constant 0 : i32
    %c0_i32_2 = arith.constant 0 : i32
    return %c0_i32, %c0_i32_0, %c0_i32_1 : i32, i32, i32
  }
  func.func @transform_4(%arg0: i32, %arg1: i32) -> (i32, i32) {
    %c0_i32 = arith.constant 0 : i32
    %c0_i32_0 = arith.constant 0 : i32
    %c0_i32_1 = arith.constant 0 : i32
    return %c0_i32, %c0_i32_0 : i32, i32
  }
  func.func @transform_5(%arg0: i32, %arg1: i32) -> (i32, i32, i32, i32) {
    %c0_i32 = arith.constant 0 : i32
    %c0_i32_0 = arith.constant 0 : i32
    %c0_i32_1 = arith.constant 0 : i32
    return %arg0, %arg1, %c0_i32, %c0_i32_0 : i32, i32, i32, i32
  }
}

</mosaic_0001>

<llo_original>
// kernel: downsample_forward.1
$region0: #{downsample_forward.1}
  #allocation0 [shape = 'u32[]', space=smem, size = 0x4, offset = 0x4, fixed_abs, tag = 'smem constant byte address 0x4 - core index']
  #allocation1 [shape = 'u32[72,128]{1,0:T(1,128)}', space=vmem, size = 0x9000, scoped, tag = 'internal scratch']
  %s0 = inlined_call_operand.vmem [shape: f32[2,9,8,12], index: 0, kind: input, shape index: {}, may-alias: {0,1}]
  %s1 = inlined_call_operand.vmem [shape: f32[2,9,8,12], index: 1, kind: input, shape index: {}, may-alias: {0,1}]
  %s2 = inlined_call_operand.vmem [shape: f32[2,8,8,12], index: 2, kind: input, shape index: {}]
  %s3 = inlined_call_operand.vmem [shape: f32[3,12,128], index: 3, kind: input, shape index: {}]
  %s4 = inlined_call_operand.vmem [shape: f32[1,128], index: 4, kind: input, shape index: {}]
  %s5 = inlined_call_operand.vmem [shape: f32[2,8,8,128], index: 5, kind: output, shape index: {}]
  %s6 = sld [smem:[#allocation0]]
  $region53: #{downsample_forward.1} parent=0
    _
  %s8 = ssub.s32 1, %s6
  %s9 = scalar_select 0, %s8, %s6
  loop: start=0, step=1, limit=6
  $region2: #{downsample_forward.1} parent=0 // loop_pre_header
    _
  $region3: #{downsample_forward.1} parent=0 // loop_header
    %s11 = sphi 0, %s15
    %p12 = scmp.ge.s32.totalorder %s11, 6
    %s18 = sphi 0, %s30
    %s19 = sphi 0, %s26
    %s20 = sphi 0, %s18
    %s21 = sphi 0, %s19
    %s22 = sphi 0, %s20
    %s23 = sphi 0, %s21
    %s35 = sphi 0, %s37
    %s38 = sphi 0, %s35
    %s39 = sphi 0, %s38
    %s55 = sphi 0, %s39
    %s67 = sphi 0, %s69
    %s70 = sphi 0, %s67
    %s71 = sphi 0, %s70
    %s87 = sphi 0, %s71
    %s95 = sphi 0, %s97
    %s98 = sphi 0, %s95
    %s99 = sphi 0, %s98
    %s115 = sphi 0, %s99
    %s119 = sphi 0, %s119
    %s121 = sphi 0, %s119
    %s122 = sphi 0, %s121
    %s136 = sphi 0, %s122
    %s140 = sphi 0, %s140
    %s142 = sphi 0, %s140
    %s143 = sphi 0, %s142
    %s157 = sphi 0, %s143
    %s165 = sphi 0, %s167
    %s168 = sphi 0, %s165
    %s169 = sphi 0, %s168
    %s185 = sphi 0, %s169
  $region4: #{downsample_forward.1} parent=0 // loop_header_branch
    %14 = sbr.rel (%p12) target = $region8
  $region5: #{downsample_forward.1} parent=0 // loop_body
    %s16 = ssub.s32 %s11, 1
    %s17 = ssub.s32 %s11, 2
    %s24 = sadd.s32 1, %s19
    %p25 = scmp.ge.s32.totalorder %s24, 2
    %s26 = scalar_select %p25, 0, %s24
    %s27 = sadd.s32 1, %s18
    %s28 = scalar_select %p25, %s27, %s18
    %p29 = scmp.ge.s32.totalorder %s28, 2
    %s30 = scalar_select %p29, 0, %s28
    %s31 = ssub.s32 %s18, %s30
    %s32 = ssub.s32 %s19, %s26
    %s33 = sor.u32 %s31, %s32
    %p34 = scmp.eq.s32.totalorder %s33, 0
    %s36 = sadd.s32 %s35, 1
    %s37 = scalar_select %p34, %s35, %s36
    %p40 = pneg %p34
    %p41 = scmp.eq.s32.totalorder %s11, 3
    %p42 = por %p40, %p41
    %p43 = scmp.ne.s32.totalorder %s35, %s38
    %p44 = scmp.eq.s32.totalorder %s11, 0
    %p45 = por %p43, %p44
    %p46 = scmp.ne.s32.totalorder %s35, %s38
    %p47 = scmp.eq.s32.totalorder %s16, 3
    %p48 = por %p46, %p47
    %p49 = scmp.ne.s32.totalorder %s38, %s39
    %p50 = scmp.eq.s32.totalorder %s16, 0
    %p51 = por %p49, %p50
    %p52 = scmp.ne.s32.totalorder %s38, %s39
    %p53 = scmp.eq.s32.totalorder %s17, 3
    %p54 = por %p52, %p53
    %p56 = scmp.ne.s32.totalorder %s39, %s55
    %p57 = scmp.eq.s32.totalorder %s17, 0
    %p58 = por %p56, %p57
    %s59 = sadd.s32 %s19, 1
    %s60 = smul.u32 %s59, 4
    %s61 = sadd.s32 %s26, 1
    %s62 = smul.u32 %s61, 4
    %s63 = ssub.s32 %s18, %s30
    %s64 = ssub.s32 %s60, %s62
    %s65 = sor.u32 %s63, %s64
    %p66 = scmp.eq.s32.totalorder %s65, 0
    %s68 = sadd.s32 %s67, 1
    %s69 = scalar_select %p66, %s67, %s68
    %p72 = pneg %p66
    %p73 = scmp.eq.s32.totalorder %s11, 3
    %p74 = por %p72, %p73
    %p75 = scmp.ne.s32.totalorder %s67, %s70
    %p76 = scmp.eq.s32.totalorder %s11, 0
    %p77 = por %p75, %p76
    %p78 = scmp.ne.s32.totalorder %s67, %s70
    %p79 = scmp.eq.s32.totalorder %s16, 3
    %p80 = por %p78, %p79
    %p81 = scmp.ne.s32.totalorder %s70, %s71
    %p82 = scmp.eq.s32.totalorder %s16, 0
    %p83 = por %p81, %p82
    %p84 = scmp.ne.s32.totalorder %s70, %s71
    %p85 = scmp.eq.s32.totalorder %s17, 3
    %p86 = por %p84, %p85
    %p88 = scmp.ne.s32.totalorder %s71, %s87
    %p89 = scmp.eq.s32.totalorder %s17, 0
    %p90 = por %p88, %p89
    %s91 = ssub.s32 %s18, %s30
    %s92 = ssub.s32 %s19, %s26
    %s93 = sor.u32 %s91, %s92
    %p94 = scmp.eq.s32.totalorder %s93, 0
    %s96 = sadd.s32 %s95, 1
    %s97 = scalar_select %p94, %s95, %s96
    %p100 = pneg %p94
    %p101 = scmp.eq.s32.totalorder %s11, 3
    %p102 = por %p100, %p101
    %p103 = scmp.ne.s32.totalorder %s95, %s98
    %p104 = scmp.eq.s32.totalorder %s11, 0
    %p105 = por %p103, %p104
    %p106 = scmp.ne.s32.totalorder %s95, %s98
    %p107 = scmp.eq.s32.totalorder %s16, 3
    %p108 = por %p106, %p107
    %p109 = scmp.ne.s32.totalorder %s98, %s99
    %p110 = scmp.eq.s32.totalorder %s16, 0
    %p111 = por %p109, %p110
    %p112 = scmp.ne.s32.totalorder %s98, %s99
    %p113 = scmp.eq.s32.totalorder %s17, 3
    %p114 = por %p112, %p113
    %p116 = scmp.ne.s32.totalorder %s99, %s115
    %p117 = scmp.eq.s32.totalorder %s17, 0
    %p118 = por %p116, %p117
    %s120 = sadd.s32 %s119, 1
    %p123 = scmp.eq.s32.totalorder %s11, 3
    %p124 = scmp.ne.s32.totalorder %s119, %s121
    %p125 = scmp.eq.s32.totalorder %s11, 0
    %p126 = por %p124, %p125
    %p127 = scmp.ne.s32.totalorder %s119, %s121
    %p128 = scmp.eq.s32.totalorder %s16, 3
    %p129 = por %p127, %p128
    %p130 = scmp.ne.s32.totalorder %s121, %s122
    %p131 = scmp.eq.s32.totalorder %s16, 0
    %p132 = por %p130, %p131
    %p133 = scmp.ne.s32.totalorder %s121, %s122
    %p134 = scmp.eq.s32.totalorder %s17, 3
    %p135 = por %p133, %p134
    %p137 = scmp.ne.s32.totalorder %s122, %s136
    %p138 = scmp.eq.s32.totalorder %s17, 0
    %p139 = por %p137, %p138
    %s141 = sadd.s32 %s140, 1
    %p144 = scmp.eq.s32.totalorder %s11, 3
    %p145 = scmp.ne.s32.totalorder %s140, %s142
    %p146 = scmp.eq.s32.totalorder %s11, 0
    %p147 = por %p145, %p146
    %p148 = scmp.ne.s32.totalorder %s140, %s142
    %p149 = scmp.eq.s32.totalorder %s16, 3
    %p150 = por %p148, %p149
    %p151 = scmp.ne.s32.totalorder %s142, %s143
    %p152 = scmp.eq.s32.totalorder %s16, 0
    %p153 = por %p151, %p152
    %p154 = scmp.ne.s32.totalorder %s142, %s143
    %p155 = scmp.eq.s32.totalorder %s17, 3
    %p156 = por %p154, %p155
    %p158 = scmp.ne.s32.totalorder %s143, %s157
    %p159 = scmp.eq.s32.totalorder %s17, 0
    %p160 = por %p158, %p159
    %s161 = ssub.s32 %s18, %s30
    %s162 = ssub.s32 %s19, %s26
    %s163 = sor.u32 %s161, %s162
    %p164 = scmp.eq.s32.totalorder %s163, 0
    %s166 = sadd.s32 %s165, 1
    %s167 = scalar_select %p164, %s165, %s166
    %p170 = pneg %p164
    %p171 = scmp.eq.s32.totalorder %s11, 3
    %p172 = por %p170, %p171
    %p173 = scmp.ne.s32.totalorder %s165, %s168
    %p174 = scmp.eq.s32.totalorder %s11, 0
    %p175 = por %p173, %p174
    %p176 = scmp.ne.s32.totalorder %s165, %s168
    %p177 = scmp.eq.s32.totalorder %s16, 3
    %p178 = por %p176, %p177
    %p179 = scmp.ne.s32.totalorder %s168, %s169
    %p180 = scmp.eq.s32.totalorder %s16, 0
    %p181 = por %p179, %p180
    %p182 = scmp.ne.s32.totalorder %s168, %s169
    %p183 = scmp.eq.s32.totalorder %s17, 3
    %p184 = por %p182, %p183
    %p186 = scmp.ne.s32.totalorder %s169, %s185
    %p187 = scmp.eq.s32.totalorder %s17, 0
    %p188 = por %p186, %p187
    %p189 = scmp.le.s32.totalorder 1, %s11
    %p190 = scmp.lt.s32.totalorder %s11, 5
    %p191 = pnand %p189, %p190
    %p192 = pneg %p191
    // Predicated region
    $region9: #{downsample_forward.1} parent=5 // pred_check
      _
    $region10: #{downsample_forward.1} parent=5 // pred_check_branch
      %194 = sbr.rel (%p191) target = $region12
    $region11: #{downsample_forward.1} parent=5 // pred_region
      %s195 = ssub.s32 %s11, 1
      // Predicated region
      $region13: #{downsample_forward.1} parent=11 // pred_check
        %p196 = pneg %p132
      $region14: #{downsample_forward.1} parent=11 // pred_check_branch
        %198 = sbr.rel (%p196) target = $region16
      $region15: #{downsample_forward.1} parent=11 // pred_region
        _
      $region16: #{downsample_forward.1} parent=11 // pred_fallthru
        _
      // Predicated region
      $region17: #{downsample_forward.1} parent=11 // pred_check
        %p199 = pneg %p153
      $region18: #{downsample_forward.1} parent=11 // pred_check_branch
        %201 = sbr.rel (%p199) target = $region20
      $region19: #{downsample_forward.1} parent=11 // pred_region
        _
      $region20: #{downsample_forward.1} parent=11 // pred_fallthru
        _
    $region12: #{downsample_forward.1} parent=5 // pred_fallthru
      _
    %p202 = scmp.lt.s32.totalorder %s11, 4
    // Predicated region
    $region21: #{downsample_forward.1} parent=5 // pred_check
      %p203 = pneg %p202
    $region22: #{downsample_forward.1} parent=5 // pred_check_branch
      %205 = sbr.rel (%p203) target = $region24
    $region23: #{downsample_forward.1} parent=5 // pred_region
      // Predicated region
      $region25: #{downsample_forward.1} parent=23 // pred_check
        %p206 = pneg %p45
      $region26: #{downsample_forward.1} parent=23 // pred_check_branch
        %208 = sbr.rel (%p206) target = $region28
      $region27: #{downsample_forward.1} parent=23 // pred_region
        %s209 = smul.u32 4, %s19
        %s210 = ssub.s32 9, %s209
        %p211 = scmp.lt.s32.totalorder %s210, 4
        %s212 = scalar_select %p211, %s210, 4
        %s213 = smul.u32 8, %s212
        %p214 = scmp.lt.s32.totalorder %s18, 1
        %s215 = scalar_select %p214, %s18, 1
        %p216 = scmp.lt.s32.totalorder %s209, 8
        %s217 = scalar_select %p216, %s209, 8
        %s218 = smul.addr %s215, 9
        %s219 = sadd.s32 %s217, %s218
        %s220 = smul.addr %s219, 8
        %s221 = scalar_lea.vmem %s0, %s220
        %s222 = smul.u32 4, %s19
        %s223 = ssub.s32 9, %s222
        %p224 = scmp.lt.s32.totalorder %s223, 4
        %s225 = scalar_select %p224, %s223, 4
        %s226 = smul.u32 8, %s225
      $region28: #{downsample_forward.1} parent=23 // pred_fallthru
        _
      // Predicated region
      $region29: #{downsample_forward.1} parent=23 // pred_check
        %p227 = pneg %p77
      $region30: #{downsample_forward.1} parent=23 // pred_check_branch
        %229 = sbr.rel (%p227) target = $region32
      $region31: #{downsample_forward.1} parent=23 // pred_region
        %s230 = sadd.s32 %s19, 1
        %s231 = smul.u32 %s230, 4
        %p232 = scmp.lt.s32.totalorder %s18, 1
        %s233 = scalar_select %p232, %s18, 1
        %p234 = scmp.lt.s32.totalorder %s231, 8
        %s235 = scalar_select %p234, %s231, 8
        %s236 = smul.addr %s233, 9
        %s237 = sadd.s32 %s235, %s236
        %s238 = smul.addr %s237, 8
        %s239 = scalar_lea.vmem %s1, %s238
        %s240 = sadd.s32 %s19, 1
        %s241 = smul.u32 %s240, 4
      $region32: #{downsample_forward.1} parent=23 // pred_fallthru
        _
      // Predicated region
      $region33: #{downsample_forward.1} parent=23 // pred_check
        %p242 = pneg %p105
      $region34: #{downsample_forward.1} parent=23 // pred_check_branch
        %244 = sbr.rel (%p242) target = $region36
      $region35: #{downsample_forward.1} parent=23 // pred_region
        %s245 = smul.u32 4, %s19
        %p246 = scmp.lt.s32.totalorder %s18, 1
        %s247 = scalar_select %p246, %s18, 1
        %p248 = scmp.lt.s32.totalorder %s245, 7
        %s249 = scalar_select %p248, %s245, 7
        %s250 = smul.addr %s247, 8
        %s251 = sadd.s32 %s249, %s250
        %s252 = smul.addr %s251, 8
        %s253 = scalar_lea.vmem %s2, %s252
        %s254 = smul.u32 4, %s19
      $region36: #{downsample_forward.1} parent=23 // pred_fallthru
        _
    $region24: #{downsample_forward.1} parent=5 // pred_fallthru
      _
    %p255 = scmp.le.s32.totalorder 1, %s11
    %p256 = scmp.lt.s32.totalorder %s11, 5
    %p257 = pnand %p255, %p256
    %p258 = pneg %p257
    // Predicated region
    $region37: #{downsample_forward.1} parent=5 // pred_check
      _
    $region38: #{downsample_forward.1} parent=5 // pred_check_branch
      %260 = sbr.rel (%p257) target = $region40
    $region39: #{downsample_forward.1} parent=5 // pred_region
      %s261 = ssub.s32 %s11, 1
      %s262 = smul.u32 4, %s21
      %s263 = ssub.s32 9, %s262
      %p264 = scmp.lt.s32.totalorder %s263, 4
      %s265 = scalar_select %p264, %s263, 4
      %s266 = smul.u32 8, %s265
      %p267 = scmp.lt.s32.totalorder %s20, 1
      %s268 = scalar_select %p267, %s20, 1
      %p269 = scmp.lt.s32.totalorder %s262, 8
      %s270 = scalar_select %p269, %s262, 8
      %s271 = smul.addr %s268, 9
      %s272 = sadd.s32 %s270, %s271
      %s273 = smul.addr %s272, 8
      %s274 = scalar_lea.vmem %s0, %s273
      %p275 = pneg %p51
      %p276 = pneg %p48
      %s277 = sadd.s32 %s21, 1
      %s278 = smul.u32 %s277, 4
      %p279 = scmp.lt.s32.totalorder %s20, 1
      %s280 = scalar_select %p279, %s20, 1
      %p281 = scmp.lt.s32.totalorder %s278, 8
      %s282 = scalar_select %p281, %s278, 8
      %s283 = smul.addr %s280, 9
      %s284 = sadd.s32 %s282, %s283
      %s285 = smul.addr %s284, 8
      %s286 = scalar_lea.vmem %s1, %s285
      %p287 = pneg %p83
      %p288 = pneg %p80
      %s289 = smul.u32 4, %s21
      %p290 = scmp.lt.s32.totalorder %s20, 1
      %s291 = scalar_select %p290, %s20, 1
      %p292 = scmp.lt.s32.totalorder %s289, 7
      %s293 = scalar_select %p292, %s289, 7
      %s294 = smul.addr %s291, 8
      %s295 = sadd.s32 %s293, %s294
      %s296 = smul.addr %s295, 8
      %s297 = scalar_lea.vmem %s2, %s296
      %p298 = pneg %p111
      %p299 = pneg %p108
      %p300 = pneg %p132
      %p301 = pneg %p129
      %p302 = pneg %p153
      %p303 = pneg %p150
      %p304 = pneg %p181
      %p305 = pneg %p178
      %s306 = smul.u32 4, %s21
      %p307 = scmp.lt.s32.totalorder %s20, 1
      %s308 = scalar_select %p307, %s20, 1
      %p309 = scmp.lt.s32.totalorder %s306, 7
      %s310 = scalar_select %p309, %s306, 7
      %s311 = smul.addr %s308, 8
      %s312 = sadd.s32 %s310, %s311
      %s313 = smul.addr %s312, 8
      %s314 = scalar_lea.vmem %s5, %s313
      %s315 = smul.u32 4, %s21
      %s316 = ssub.s32 9, %s315
      %p317 = scmp.lt.s32.totalorder %s316, 4
      %s318 = scalar_select %p317, %s316, 4
      %s319 = smul.u32 8, %s318
      %p320 = scmp.lt.s32.totalorder %s20, 1
      %s321 = scalar_select %p320, %s20, 1
      %p322 = scmp.lt.s32.totalorder %s315, 8
      %s323 = scalar_select %p322, %s315, 8
      %s324 = smul.addr %s321, 9
      %s325 = sadd.s32 %s323, %s324
      %s326 = smul.addr %s325, 8
      %s327 = scalar_lea.vmem %s0, %s326
      %s328 = smul.u32 4, %s21
      %s329 = ssub.s32 9, %s328
      %p330 = scmp.lt.s32.totalorder %s329, 4
      %s331 = scalar_select %p330, %s329, 4
      %s332 = smul.u32 8, %s331
      %s333 = sadd.s32 %s21, 1
      %s334 = smul.u32 %s333, 4
      %p335 = scmp.lt.s32.totalorder %s20, 1
      %s336 = scalar_select %p335, %s20, 1
      %p337 = scmp.lt.s32.totalorder %s334, 8
      %s338 = scalar_select %p337, %s334, 8
      %s339 = smul.addr %s336, 9
      %s340 = sadd.s32 %s338, %s339
      %s341 = smul.addr %s340, 8
      %s342 = scalar_lea.vmem %s1, %s341
      %s343 = sadd.s32 %s21, 1
      %s344 = smul.u32 %s343, 4
      %s345 = smul.u32 4, %s21
      %p346 = scmp.lt.s32.totalorder %s20, 1
      %s347 = scalar_select %p346, %s20, 1
      %p348 = scmp.lt.s32.totalorder %s345, 7
      %s349 = scalar_select %p348, %s345, 7
      %s350 = smul.addr %s347, 8
      %s351 = sadd.s32 %s349, %s350
      %s352 = smul.addr %s351, 8
      %s353 = scalar_lea.vmem %s2, %s352
      %s354 = smul.u32 4, %s21
      %s355 = smul.u32 4, %s21
      %p356 = scmp.lt.s32.totalorder %s20, 1
      %s357 = scalar_select %p356, %s20, 1
      %p358 = scmp.lt.s32.totalorder %s355, 7
      %s359 = scalar_select %p358, %s355, 7
      %s360 = smul.addr %s357, 8
      %s361 = sadd.s32 %s359, %s360
      %s362 = smul.addr %s361, 8
      %s363 = scalar_lea.vmem %s5, %s362
      %s364 = smul.u32 4, %s21
      %v365 = vld [vmem:[%s327] sm:$0xff]
      %v366 = vld [vmem:[%s327 + $0x8] sm:$0xff]
      %v367 = vld [vmem:[%s327 + $0x10] sm:$0xff]
      %v368 = vld [vmem:[%s327 + $0x18] sm:$0xff]
      %v369 = vld [vmem:[%s353] sm:$0xff]
      %v370 = vld [vmem:[%s353 + $0x8] sm:$0xff]
      %v371 = vld [vmem:[%s353 + $0x10] sm:$0xff]
      %v372 = vld [vmem:[%s353 + $0x18] sm:$0xff]
      %v373 = vld [vmem:[%s342] sm:$0xff]
      %v374 = vld [vmem:[%s3] sm:$0xff]
      %v375 = vld [vmem:[%s3 + $0x8] sm:$0xf]
      %s376 = scalar_lea.vmem %s3, 16
      %v377 = vld [vmem:[%s376] sm:$0xff]
      %v378 = vld [vmem:[%s376 + $0x8] sm:$0xf]
      %vm379 = vcmask 97280
      %v381 = vsel %vm379, %v369, 0
      %v384 = vsel %vm379, %v370, 0
      %v387 = vsel %vm379, %v371, 0
      %v390 = vsel %vm379, %v372, 0
      %vm392 = vcmask 1043456
      %v394 = vsel %vm392, %v378, 0
      %396 = vmatpush.msra.mxu0 0.0
      %397 = vmatpush.msra.mxu0 0.0
      %398 = vmatpush.msra.mxu0 0.0
      %399 = vmatpush.msra.mxu0 0.0
      %400 = vmatpush.msra.mxu0 0.0
      %401 = vmatpush.msra.mxu0 0.0
      %402 = vmatpush.msra.mxu0 0.0
      %403 = vmatpush.msra.mxu0 0.0
      %404 = vmatpush.msra.mxu0 0.0
      %405 = vmatpush.msra.mxu0 0.0
      %406 = vmatpush.msra.mxu0 0.0
      %407 = vmatpush.msra.mxu0 0.0
      %408 = vmatpush.msra.mxu0 0.0
      %409 = vmatpush.msra.mxu0 0.0
      %410 = vmatpush.msra.mxu0 %v394
      %411 = vmatpush.msra.mxu0 %v377
      %412 = vmatmul.f32.gmra.mxu0 %v381
      %v413 = vpop.f32.mrf.mxu0
      %v414 = vadd.f32 0.0, %v413
      %415 = vmatmul.f32.gmra.mxu0 %v384
      %v416 = vpop.f32.mrf.mxu0
      %v417 = vadd.f32 0.0, %v416
      %418 = vmatmul.f32.gmra.mxu0 %v387
      %v419 = vpop.f32.mrf.mxu0
      %v420 = vadd.f32 0.0, %v419
      %421 = vmatmul.f32.gmra.mxu0 %v390
      %v422 = vpop.f32.mrf.mxu0
      %v423 = vadd.f32 0.0, %v422
      %424 = vdwg.mxu0
      %v426 = vsel %vm379, %v365, 0
      %v429 = vsel %vm379, %v366, 0
      %v432 = vsel %vm379, %v367, 0
      %v435 = vsel %vm379, %v368, 0
      %v438 = vsel %vm392, %v375, 0
      %440 = vmatpush.msra.mxu0 0.0
      %441 = vmatpush.msra.mxu0 0.0
      %442 = vmatpush.msra.mxu0 0.0
      %443 = vmatpush.msra.mxu0 0.0
      %444 = vmatpush.msra.mxu0 0.0
      %445 = vmatpush.msra.mxu0 0.0
      %446 = vmatpush.msra.mxu0 0.0
      %447 = vmatpush.msra.mxu0 0.0
      %448 = vmatpush.msra.mxu0 0.0
      %449 = vmatpush.msra.mxu0 0.0
      %450 = vmatpush.msra.mxu0 0.0
      %451 = vmatpush.msra.mxu0 0.0
      %452 = vmatpush.msra.mxu0 0.0
      %453 = vmatpush.msra.mxu0 0.0
      %454 = vmatpush.msra.mxu0 %v438
      %455 = vmatpush.msra.mxu0 %v374
      %456 = vmatmul.f32.gmra.mxu0 %v426
      %v457 = vpop.f32.mrf.mxu0
      %v458 = vadd.f32 %v414, %v457
      %459 = vmatmul.f32.gmra.mxu0 %v429
      %v460 = vpop.f32.mrf.mxu0
      %v461 = vadd.f32 %v417, %v460
      %462 = vmatmul.f32.gmra.mxu0 %v432
      %v463 = vpop.f32.mrf.mxu0
      %v464 = vadd.f32 %v420, %v463
      %465 = vmatmul.f32.gmra.mxu0 %v435
      %v466 = vpop.f32.mrf.mxu0
      %v467 = vadd.f32 %v423, %v466
      %468 = vdwg.mxu0
      %v469 = vld [vmem:[%s4] sm:$0x1]
      %v471 = vperm.slane %v469, 0
      %v473 = vadd.f32 %v458, %v471
      %v474 = vadd.f32 %v461, %v471
      %v475 = vadd.f32 %v464, %v471
      %v476 = vadd.f32 %v467, %v471
      %s477 = scalar_lea.vmem %s3, 32
      %v478 = vld [vmem:[%s477] sm:$0xff]
      %v479 = vld [vmem:[%s477 + $0x8] sm:$0xf]
      %v481 = vsel %vm379, %v373, 0
      %v484 = vsel %vm392, %v479, 0
      %486 = vmatpush.msra.mxu0 0.0
      %487 = vmatpush.msra.mxu0 0.0
      %488 = vmatpush.msra.mxu0 0.0
      %489 = vmatpush.msra.mxu0 0.0
      %490 = vmatpush.msra.mxu0 0.0
      %491 = vmatpush.msra.mxu0 0.0
      %492 = vmatpush.msra.mxu0 0.0
      %493 = vmatpush.msra.mxu0 0.0
      %494 = vmatpush.msra.mxu0 0.0
      %495 = vmatpush.msra.mxu0 0.0
      %496 = vmatpush.msra.mxu0 0.0
      %497 = vmatpush.msra.mxu0 0.0
      %498 = vmatpush.msra.mxu0 0.0
      %499 = vmatpush.msra.mxu0 0.0
      %500 = vmatpush.msra.mxu0 %v484
      %501 = vmatpush.msra.mxu0 %v478
      %502 = vmatmul.f32.gmra.mxu0 %v481
      %v503 = vpop.f32.mrf.mxu0
      %v504 = vadd.f32 0.0, %v503
      %505 = vdwg.mxu0
      %v506 = vadd.f32 %v476, %v504
      %s507 = scalar_lea.vmem %s363, 24
      %508 = vst [vmem:[%s507] sm:$0xff] %v506
      %v509 = vld [vmem:[%s477] sm:$0xff]
      %v510 = vld [vmem:[%s477 + $0x8] sm:$0xf]
      %v512 = vsel %vm392, %v510, 0
      %514 = vmatpush.msra.mxu0 0.0
      %515 = vmatpush.msra.mxu0 0.0
      %516 = vmatpush.msra.mxu0 0.0
      %517 = vmatpush.msra.mxu0 0.0
      %518 = vmatpush.msra.mxu0 0.0
      %519 = vmatpush.msra.mxu0 0.0
      %520 = vmatpush.msra.mxu0 0.0
      %521 = vmatpush.msra.mxu0 0.0
      %522 = vmatpush.msra.mxu0 0.0
      %523 = vmatpush.msra.mxu0 0.0
      %524 = vmatpush.msra.mxu0 0.0
      %525 = vmatpush.msra.mxu0 0.0
      %526 = vmatpush.msra.mxu0 0.0
      %527 = vmatpush.msra.mxu0 0.0
      %528 = vmatpush.msra.mxu0 %v512
      %529 = vmatpush.msra.mxu0 %v509
      %530 = vmatmul.f32.gmra.mxu0 %v429
      %v531 = vpop.f32.mrf.mxu0
      %v532 = vadd.f32 0.0, %v531
      %533 = vmatmul.f32.gmra.mxu0 %v432
      %v534 = vpop.f32.mrf.mxu0
      %v535 = vadd.f32 0.0, %v534
      %536 = vmatmul.f32.gmra.mxu0 %v435
      %v537 = vpop.f32.mrf.mxu0
      %v538 = vadd.f32 0.0, %v537
      %539 = vdwg.mxu0
      %v540 = vadd.f32 %v473, %v532
      %v541 = vadd.f32 %v474, %v535
      %v542 = vadd.f32 %v475, %v538
      %543 = vst [vmem:[%s363] sm:$0xff] %v540
      %544 = vst [vmem:[%s363 + $0x8] sm:$0xff] %v541
      %545 = vst [vmem:[%s363 + $0x10] sm:$0xff] %v542
      %s546 = smul.u32 4, %s21
      %p547 = scmp.lt.s32.totalorder %s20, 1
      %s548 = scalar_select %p547, %s20, 1
      %p549 = scmp.lt.s32.totalorder %s546, 7
      %s550 = scalar_select %p549, %s546, 7
      %s551 = smul.addr %s548, 8
      %s552 = sadd.s32 %s550, %s551
      %s553 = smul.addr %s552, 8
      %s554 = scalar_lea.vmem %s5, %s553
      // Predicated region
      $region41: #{downsample_forward.1} parent=39 // pred_check
        %p555 = pneg %p178
      $region42: #{downsample_forward.1} parent=39 // pred_check_branch
        %557 = sbr.rel (%p555) target = $region44
      $region43: #{downsample_forward.1} parent=39 // pred_region
        %s558 = smul.u32 4, %s21
      $region44: #{downsample_forward.1} parent=39 // pred_fallthru
        _
    $region40: #{downsample_forward.1} parent=5 // pred_fallthru
      _
    %p559 = scmp.le.s32.totalorder 2, %s11
    // Predicated region
    $region45: #{downsample_forward.1} parent=5 // pred_check
      %p560 = pneg %p559
    $region46: #{downsample_forward.1} parent=5 // pred_check_branch
      %562 = sbr.rel (%p560) target = $region48
    $region47: #{downsample_forward.1} parent=5 // pred_region
      %s563 = ssub.s32 %s11, 2
      // Predicated region
      $region49: #{downsample_forward.1} parent=47 // pred_check
        %p564 = pneg %p184
      $region50: #{downsample_forward.1} parent=47 // pred_check_branch
        %566 = sbr.rel (%p564) target = $region52
      $region51: #{downsample_forward.1} parent=47 // pred_region
        %s567 = smul.u32 4, %s23
        %p568 = scmp.lt.s32.totalorder %s22, 1
        %s569 = scalar_select %p568, %s22, 1
        %p570 = scmp.lt.s32.totalorder %s567, 7
        %s571 = scalar_select %p570, %s567, 7
        %s572 = smul.addr %s569, 8
        %s573 = sadd.s32 %s571, %s572
        %s574 = smul.addr %s573, 8
        %s575 = scalar_lea.vmem %s5, %s574
      $region52: #{downsample_forward.1} parent=47 // pred_fallthru
        _
    $region48: #{downsample_forward.1} parent=5 // pred_fallthru
      _
  $region6: #{downsample_forward.1} parent=0 // loop_footer
    %s15 = sadd.s32 1, %s11
  $region7: #{downsample_forward.1} parent=0 // loop_footer_branch
    %10 = sbr.rel target = $region3
  $region8: #{downsample_forward.1} parent=0 // loop_exit
    _

</llo_original>
